<compile_context>
chip_gen: v7x
topology: tpu7x:2x2x1
jax: 0.10.0
libtpu: 0.0.40
codegen_flags: <defaults>
</compile_context>

<pallas_src>
import functools

import jax
import jax.numpy as jnp
from jax import lax
from jax.experimental import pallas as pl
from jax.experimental.pallas import tpu as pltpu


def _temporal_block_kernel(
    x_ref,      # (1, C_in, T)        raw (unpadded) input time tile
    w1_ref,     # (C_out, K*C_in)     bf16 stacked weight-normed conv1 weight
    b1_ref,     # (C_out, 1)          f32
    w2_ref,     # (C_out, K*C_out)    bf16
    b2_ref,     # (C_out, 1)          f32
    wds_ref,    # (C_out, C_in)       bf16 (BN-scale folded; dummy if identity)
    scale_ref,  # (C_out, 1)          f32 folded BN scale
    shift_ref,  # (C_out, 1)          f32 folded BN shift (+ scale*ds_bias)
    o_ref,      # (1, C_out, T)
    x_scr,      # VMEM (C_in,  a+T)   bf16 staging (causal pad + halo carry)
    h1_scr,     # VMEM (C_out, a+T)   bf16 staging (causal pad + halo carry)
    *,
    k: int,
    d: int,
    p: int,
    a: int,        # 128-aligned staging offset, a >= p
    t_size: int,
    has_downsample: bool,
):
    t = pl.program_id(1)

    if p > 0:
        @pl.when(t == 0)
        def _init_pad():
            # Zero ONLY the p causal-padding lanes.  Done at time-tile 0 of
            # every batch element (cheap) so it stays correct even when the
            # batch grid axis is sharded across TensorCores.
            x_scr[:, a - p:a] = jnp.zeros((x_scr.shape[0], p), x_scr.dtype)
            h1_scr[:, a - p:a] = jnp.zeros((h1_scr.shape[0], p), h1_scr.dtype)

        @pl.when(t > 0)
        def _carry_halo():
            # Carry the last p time steps of the previous tile as the halo.
            x_scr[:, a - p:a] = x_scr[:, a + t_size - p:a + t_size]
            h1_scr[:, a - p:a] = h1_scr[:, a + t_size - p:a + t_size]

    x_f32 = x_ref[0].astype(jnp.float32)          # (C_in, T) full-precision
    x_bf = x_f32.astype(jnp.bfloat16)
    x_scr[:, a:a + t_size] = x_bf                 # 128-lane-aligned dense store

    # ---- conv1 (dilated, causal): ONE matmul with contraction K*C_in ----
    stk1 = jnp.concatenate(
        [x_scr[:, a - p + j * d: a - p + j * d + t_size] for j in range(k)],
        axis=0)                                   # (K*C_in, T) bf16
    h1 = jnp.dot(w1_ref[...], stk1, preferred_element_type=jnp.float32)
    h1 = jnp.maximum(h1 + b1_ref[...], 0.0)
    # TODO(synk): dropout1 == identity (inference mode).
    h1_scr[:, a:a + t_size] = h1.astype(jnp.bfloat16)

    # ---- conv2 (dilated, causal): ONE matmul with contraction K*C_out ----
    stk2 = jnp.concatenate(
        [h1_scr[:, a - p + j * d: a - p + j * d + t_size] for j in range(k)],
        axis=0)                                   # (K*C_out, T) bf16
    h2 = jnp.dot(w2_ref[...], stk2, preferred_element_type=jnp.float32)
    h2 = jnp.maximum(h2 + b2_ref[...], 0.0)
    # TODO(synk): dropout2 == identity (inference mode).

    # ---- residual + folded BatchNorm (inference) + final ReLU ----
    scale = scale_ref[...]
    shift = shift_ref[...]
    if has_downsample:
        # BN scale already folded into wds / shift in the wrapper.
        res = jnp.dot(wds_ref[...], x_bf, preferred_element_type=jnp.float32)
        out = jnp.maximum(scale * h2 + res + shift, 0.0)
    else:
        out = jnp.maximum(scale * (h2 + x_f32) + shift, 0.0)
    o_ref[0] = out.astype(o_ref.dtype)


def weight_norm_weight(v, g):
    """Effective Conv1d weight under torch weight_norm (dim=0): g * v / ||v||."""
    v32 = v.astype(jnp.float32)
    norm = jnp.sqrt(jnp.sum(v32 * v32, axis=(1, 2), keepdims=True))
    return (g.astype(jnp.float32).reshape(-1, 1, 1) / norm) * v32


def _pick_time_tile(l, p, cap):
    """Largest multiple of 128 that divides L, is <= cap and >= p; else full L."""
    if l <= cap:
        return l
    start = (min(cap, l) // 128) * 128
    for cand in range(start, 0, -128):
        if l % cand == 0 and cand >= p:
            return cand
    return l


def temporal_block(
    x,                                # (N, C_in, L)
    conv1_v, conv1_g, conv1_b,        # (C_out, C_in, K), (C_out,), (C_out,)
    conv2_v, conv2_g, conv2_b,        # (C_out, C_out, K), (C_out,), (C_out,)
    ds_w=None, ds_b=None,             # (C_out, C_in), (C_out,)   or None
    bn_gamma=None, bn_beta=None, bn_mean=None, bn_var=None,
    *,
    kernel_size, dilation, padding, eps=1e-5, time_tile=2048,
):
    n, c_in, l = x.shape
    c_out = conv1_v.shape[0]
    # The module's residual add only works for the TCN causal-padding convention.
    assert padding == dilation * (kernel_size - 1), (
        "TemporalBlock requires padding == dilation * (kernel_size - 1)")
    p = padding
    has_downsample = ds_w is not None
    if not has_downsample:
        assert c_in == c_out, (
            "identity residual path requires n_inputs == n_outputs "
            "(PyTorch module would raise a shape error here)")

    # ---- tiny parameter preprocessing (fused by XLA, runs once) ----
    w1 = weight_norm_weight(conv1_v, conv1_g)              # (C_out, C_in, K) f32
    w2 = weight_norm_weight(conv2_v, conv2_g)              # (C_out, C_out, K)
    # Stacked layout: column j*C + i must multiply window j, channel i.
    w1_stk = jnp.transpose(w1, (0, 2, 1)).reshape(
        c_out, kernel_size * c_in).astype(jnp.bfloat16)
    w2_stk = jnp.transpose(w2, (0, 2, 1)).reshape(
        c_out, kernel_size * c_out).astype(jnp.bfloat16)
    b1 = conv1_b.astype(jnp.float32).reshape(c_out, 1)
    b2 = conv2_b.astype(jnp.float32).reshape(c_out, 1)

    bn_gamma = jnp.ones((c_out,), jnp.float32) if bn_gamma is None else bn_gamma
    bn_beta = jnp.zeros((c_out,), jnp.float32) if bn_beta is None else bn_beta
    bn_mean = jnp.zeros((c_out,), jnp.float32) if bn_mean is None else bn_mean
    bn_var = jnp.ones((c_out,), jnp.float32) if bn_var is None else bn_var
    scale = (bn_gamma.astype(jnp.float32)
             / jnp.sqrt(bn_var.astype(jnp.float32) + eps)).reshape(c_out, 1)
    shift = (bn_beta.astype(jnp.float32).reshape(c_out, 1)
             - bn_mean.astype(jnp.float32).reshape(c_out, 1) * scale)

    if has_downsample:
        # Fold BN scale into the 1x1 downsample weight and its bias into shift.
        wds_eff = (scale * ds_w.reshape(c_out, c_in).astype(jnp.float32)
                   ).astype(jnp.bfloat16)
        shift_eff = shift + scale * ds_b.astype(jnp.float32).reshape(c_out, 1)
    else:
        wds_eff = jnp.zeros((c_out, c_in), jnp.bfloat16)   # unused by kernel
        shift_eff = shift

    # ---- tiling ----
    t_size = _pick_time_tile(l, p, time_tile)
    nt = l // t_size
    a = (-(-p // 128)) * 128 if p > 0 else 0               # aligned pad/halo offset
    lp = a + t_size

    kernel = functools.partial(
        _temporal_block_kernel,
        k=kernel_size, d=dilation, p=p, a=a, t_size=t_size,
        has_downsample=has_downsample,
    )

    # VMEM budget: double-buffered x/out blocks + weights + scratches + temporaries.
    itemsize = x.dtype.itemsize
    blk_bytes = (c_in + c_out) * t_size * itemsize
    w_bytes = 2 * (w1_stk.size + w2_stk.size + wds_eff.size) + 4 * 4 * c_out
    scr_bytes = 2 * (c_in + c_out) * lp
    tmp_bytes = (2 * kernel_size * (c_in + c_out) * t_size
                 + 4 * 4 * c_out * t_size)
    vmem_limit = int(min(
        64 * 1024 * 1024,
        max(2 * (blk_bytes + w_bytes) + scr_bytes + 2 * tmp_bytes + (4 << 20),
            16 * 1024 * 1024)))

    return pl.pallas_call(
        kernel,
        out_shape=jax.ShapeDtypeStruct((n, c_out, l), x.dtype),
        grid_spec=pltpu.PrefetchScalarGridSpec(
            num_scalar_prefetch=0,
            grid=(n, nt),
            in_specs=[
                pl.BlockSpec((1, c_in, t_size), lambda i, t: (i, 0, t)),
                pl.BlockSpec((c_out, kernel_size * c_in), lambda i, t: (0, 0)),
                pl.BlockSpec((c_out, 1), lambda i, t: (0, 0)),
                pl.BlockSpec((c_out, kernel_size * c_out), lambda i, t: (0, 0)),
                pl.BlockSpec((c_out, 1), lambda i, t: (0, 0)),
                pl.BlockSpec((c_out, c_in), lambda i, t: (0, 0)),
                pl.BlockSpec((c_out, 1), lambda i, t: (0, 0)),
                pl.BlockSpec((c_out, 1), lambda i, t: (0, 0)),
            ],
            out_specs=pl.BlockSpec((1, c_out, t_size), lambda i, t: (i, 0, t)),
            scratch_shapes=[
                pltpu.VMEM((c_in, lp), jnp.bfloat16),
                pltpu.VMEM((c_out, lp), jnp.bfloat16),
            ],
        ),
        compiler_params=pltpu.CompilerParams(
            dimension_semantics=("parallel", "arbitrary"),
            vmem_limit_bytes=vmem_limit,
        ),
    )(x, w1_stk, b1, w2_stk, b2, wds_eff, scale, shift_eff)


# ---------------------------------------------------------------------------
# Pure-JAX reference with identical (inference) semantics.
# ---------------------------------------------------------------------------
def ref_temporal_block(x, conv1_v, conv1_g, conv1_b, conv2_v, conv2_g, conv2_b,
                       ds_w, ds_b, bn_gamma, bn_beta, bn_mean, bn_var,
                       *, kernel_size, dilation, padding, eps=1e-5):
    w1 = weight_norm_weight(conv1_v, conv1_g)
    w2 = weight_norm_weight(conv2_v, conv2_g)

    def causal_conv(inp, w, b):
        inp_p = jnp.pad(inp, ((0, 0), (0, 0), (padding, 0)))
        out = lax.conv_general_dilated(
            inp_p, w, window_strides=(1,), padding="VALID",
            rhs_dilation=(dilation,),
            dimension_numbers=("NCH", "OIH", "NCH"),
            precision=lax.Precision.HIGHEST)
        return out + b[None, :, None]

    h = jnp.maximum(causal_conv(x, w1, conv1_b), 0.0)
    h = jnp.maximum(causal_conv(h, w2, conv2_b), 0.0)
    if ds_w is not None:
        res = jnp.einsum("oc,ncl->nol", ds_w, x,
                         precision=lax.Precision.HIGHEST) + ds_b[None, :, None]
    else:
        res = x
    sc = bn_gamma / jnp.sqrt(bn_var + eps)
    sh = bn_beta - bn_mean * sc
    return jnp.maximum(sc[None, :, None] * (h + res) + sh[None, :, None], 0.0)


def _run_case(key, n, c_in, c_out, l, k, dilation, *, downsample, time_tile=2048):
    padding = dilation * (k - 1)
    ks = jax.random.split(key, 13)
    x = jax.random.normal(ks[0], (n, c_in, l), dtype=jnp.float32)

    conv1_v = 0.01 * jax.random.normal(ks[1], (c_out, c_in, k), jnp.float32)
    conv1_g = 0.01 + 0.01 * jnp.abs(jax.random.normal(ks[2], (c_out,), jnp.float32))
    conv1_b = 0.01 * jax.random.normal(ks[3], (c_out,), jnp.float32)
    conv2_v = 0.01 * jax.random.normal(ks[4], (c_out, c_out, k), jnp.float32)
    conv2_g = 0.01 + 0.01 * jnp.abs(jax.random.normal(ks[5], (c_out,), jnp.float32))
    conv2_b = 0.01 * jax.random.normal(ks[6], (c_out,), jnp.float32)
    if downsample:
        ds_w = 0.01 * jax.random.normal(ks[7], (c_out, c_in), jnp.float32)
        ds_b = 0.01 * jax.random.normal(ks[8], (c_out,), jnp.float32)
    else:
        ds_w = ds_b = None
    bn_gamma = 0.5 + jax.random.uniform(ks[9], (c_out,), jnp.float32)
    bn_beta = 0.1 * jax.random.normal(ks[10], (c_out,), jnp.float32)
    bn_mean = 0.1 * jax.random.normal(ks[11], (c_out,), jnp.float32)
    bn_var = 0.5 + jax.random.uniform(ks[12], (c_out,), jnp.float32)

    y = temporal_block(
        x, conv1_v, conv1_g, conv1_b, conv2_v, conv2_g, conv2_b,
        ds_w=ds_w, ds_b=ds_b,
        bn_gamma=bn_gamma, bn_beta=bn_beta, bn_mean=bn_mean, bn_var=bn_var,
        kernel_size=k, dilation=dilation, padding=padding, time_tile=time_tile,
    )
    y = jax.block_until_ready(y)
    assert y.shape == (n, c_out, l), y.shape

    y_ref = ref_temporal_block(
        x, conv1_v, conv1_g, conv1_b, conv2_v, conv2_g, conv2_b,
        ds_w, ds_b, bn_gamma, bn_beta, bn_mean, bn_var,
        kernel_size=k, dilation=dilation, padding=padding)
    max_err = float(jnp.max(jnp.abs(y - y_ref)))
    assert jnp.allclose(y, y_ref, atol=5e-3, rtol=2e-2), (
        f"max abs err {max_err} (n={n} c_in={c_in} c_out={c_out} l={l} "
        f"k={k} d={dilation} ds={downsample})")


if __name__ == "__main__":
    key = jax.random.PRNGKey(0)
    k0, k1, k2 = jax.random.split(key, 3)

    # Case A: downsample residual (C_in != C_out), single time tile.
    _run_case(k0, n=2, c_in=4, c_out=8, l=16, k=3, dilation=1, downsample=True)

    # Case B: identity residual (C_in == C_out), larger dilation.
    _run_case(k1, n=2, c_in=8, c_out=8, l=16, k=3, dilation=2, downsample=False)

    # Case C: exercises the halo-carried time tiling (nt = 2).
    _run_case(k2, n=2, c_in=4, c_out=8, l=256, k=3, dilation=2, downsample=True,
              time_tile=128)

    print("KERNEL_OK")
</pallas_src>

<mosaic_0001>
module attributes {stable_mosaic.version = 11 : i64} {
  func.func @_temporal_block_kernel(%arg0: i32, %arg1: i32, %arg2: memref<1x4x16xf32, #tpu.memory_space<vmem>>, %arg3: memref<8x12xbf16, #tpu.memory_space<vmem>>, %arg4: memref<8x1xf32, #tpu.memory_space<vmem>>, %arg5: memref<8x24xbf16, #tpu.memory_space<vmem>>, %arg6: memref<8x1xf32, #tpu.memory_space<vmem>>, %arg7: memref<8x4xbf16, #tpu.memory_space<vmem>>, %arg8: memref<8x1xf32, #tpu.memory_space<vmem>>, %arg9: memref<8x1xf32, #tpu.memory_space<vmem>>, %arg10: memref<1x8x16xf32, #tpu.memory_space<vmem>>, %arg11: memref<4x144xbf16, #tpu.memory_space<vmem>>, %arg12: memref<8x144xbf16, #tpu.memory_space<vmem>>) attributes {dimension_semantics = [#tpu.dimension_semantics<parallel>, #tpu.dimension_semantics<arbitrary>], iteration_bounds = array<i64: 2, 1>, scalar_prefetch = 0 : i64, scratch_operands = 2 : i64, tpu.core_type = #tpu.core_type<tc>, window_params = [{transform_indices = @transform_0, window_bounds = array<i64: 1, 4, 16>}, {pipeline_mode = #tpu.pipeline_mode<synchronous>, transform_indices = @transform_1, window_bounds = array<i64: 8, 12>}, {pipeline_mode = #tpu.pipeline_mode<synchronous>, transform_indices = @transform_2, window_bounds = array<i64: 8, 1>}, {pipeline_mode = #tpu.pipeline_mode<synchronous>, transform_indices = @transform_3, window_bounds = array<i64: 8, 24>}, {pipeline_mode = #tpu.pipeline_mode<synchronous>, transform_indices = @transform_4, window_bounds = array<i64: 8, 1>}, {pipeline_mode = #tpu.pipeline_mode<synchronous>, transform_indices = @transform_5, window_bounds = array<i64: 8, 4>}, {pipeline_mode = #tpu.pipeline_mode<synchronous>, transform_indices = @transform_6, window_bounds = array<i64: 8, 1>}, {pipeline_mode = #tpu.pipeline_mode<synchronous>, transform_indices = @transform_7, window_bounds = array<i64: 8, 1>}, {transform_indices = @transform_8, window_bounds = array<i64: 1, 8, 16>}]} {
    %c0_i32 = arith.constant 0 : i32
    %0 = arith.cmpi eq, %arg1, %c0_i32 : i32
    %1 = arith.extui %0 : i1 to i32
    %c0_i32_0 = arith.constant 0 : i32
    %2 = arith.cmpi ne, %1, %c0_i32_0 : i32
    scf.if %2 {
      %cst_40 = arith.constant 0.000000e+00 : bf16
      %48 = vector.broadcast %cst_40 : bf16 to vector<4x2xbf16>
      %c0_41 = arith.constant 0 : index
      %c126_42 = arith.constant 126 : index
      %49 = vector.load %arg11[%c0_41, %c126_42] : memref<4x144xbf16, #tpu.memory_space<vmem>>, vector<4x2xbf16>
      tpu.vector_store %arg11[%c0_41, %c126_42], %48 {strides = array<i32>} : memref<4x144xbf16, #tpu.memory_space<vmem>>, vector<4x2xbf16>,
      %cst_43 = arith.constant 0.000000e+00 : bf16
      %50 = vector.broadcast %cst_43 : bf16 to vector<8x2xbf16>
      %c0_44 = arith.constant 0 : index
      %c126_45 = arith.constant 126 : index
      %51 = vector.load %arg12[%c0_44, %c126_45] : memref<8x144xbf16, #tpu.memory_space<vmem>>, vector<8x2xbf16>
      tpu.vector_store %arg12[%c0_44, %c126_45], %50 {strides = array<i32>} : memref<8x144xbf16, #tpu.memory_space<vmem>>, vector<8x2xbf16>,
    } else {
    }
    %c0_i32_1 = arith.constant 0 : i32
    %3 = arith.cmpi sgt, %arg1, %c0_i32_1 : i32
    %4 = arith.extui %3 : i1 to i32
    %c0_i32_2 = arith.constant 0 : i32
    %5 = arith.cmpi ne, %4, %c0_i32_2 : i32
    scf.if %5 {
      %c0_40 = arith.constant 0 : index
      %c142 = arith.constant 142 : index
      %48 = vector.load %arg11[%c0_40, %c142] : memref<4x144xbf16, #tpu.memory_space<vmem>>, vector<4x2xbf16>
      %c0_41 = arith.constant 0 : index
      %c126_42 = arith.constant 126 : index
      %49 = vector.load %arg11[%c0_41, %c126_42] : memref<4x144xbf16, #tpu.memory_space<vmem>>, vector<4x2xbf16>
      tpu.vector_store %arg11[%c0_41, %c126_42], %48 {strides = array<i32>} : memref<4x144xbf16, #tpu.memory_space<vmem>>, vector<4x2xbf16>,
      %c0_43 = arith.constant 0 : index
      %c142_44 = arith.constant 142 : index
      %50 = vector.load %arg12[%c0_43, %c142_44] : memref<8x144xbf16, #tpu.memory_space<vmem>>, vector<8x2xbf16>
      %c0_45 = arith.constant 0 : index
      %c126_46 = arith.constant 126 : index
      %51 = vector.load %arg12[%c0_45, %c126_46] : memref<8x144xbf16, #tpu.memory_space<vmem>>, vector<8x2xbf16>
      tpu.vector_store %arg12[%c0_45, %c126_46], %50 {strides = array<i32>} : memref<8x144xbf16, #tpu.memory_space<vmem>>, vector<8x2xbf16>,
    } else {
    }
    %c0 = arith.constant 0 : index
    %c0_3 = arith.constant 0 : index
    %c0_4 = arith.constant 0 : index
    %6 = vector.load %arg2[%c0, %c0_3, %c0_4] : memref<1x4x16xf32, #tpu.memory_space<vmem>>, vector<1x4x16xf32>
    %7 = vector.shape_cast %6 : vector<1x4x16xf32> to vector<4x16xf32>
    %8 = arith.truncf %7 : vector<4x16xf32> to vector<4x16xbf16>
    %c0_5 = arith.constant 0 : index
    %c128 = arith.constant 128 : index
    %9 = vector.load %arg11[%c0_5, %c128] : memref<4x144xbf16, #tpu.memory_space<vmem>>, vector<4x16xbf16>
    tpu.vector_store %arg11[%c0_5, %c128], %8 {strides = array<i32>} : memref<4x144xbf16, #tpu.memory_space<vmem>>, vector<4x16xbf16>,
    %c0_6 = arith.constant 0 : index
    %c126 = arith.constant 126 : index
    %10 = vector.load %arg11[%c0_6, %c126] : memref<4x144xbf16, #tpu.memory_space<vmem>>, vector<4x16xbf16>
    %c0_7 = arith.constant 0 : index
    %c127 = arith.constant 127 : index
    %11 = vector.load %arg11[%c0_7, %c127] : memref<4x144xbf16, #tpu.memory_space<vmem>>, vector<4x16xbf16>
    %c0_8 = arith.constant 0 : index
    %c128_9 = arith.constant 128 : index
    %12 = vector.load %arg11[%c0_8, %c128_9] : memref<4x144xbf16, #tpu.memory_space<vmem>>, vector<4x16xbf16>
    %13 = tpu.concatenate %10, %11, %12 in 0 : vector<4x16xbf16>, vector<4x16xbf16>, vector<4x16xbf16> -> vector<12x16xbf16>
    %c0_10 = arith.constant 0 : index
    %c0_11 = arith.constant 0 : index
    %14 = vector.load %arg3[%c0_10, %c0_11] : memref<8x12xbf16, #tpu.memory_space<vmem>>, vector<8x12xbf16>
    %cst = arith.constant dense<0.000000e+00> : vector<8x16xf32>
    %15 = tpu.matmul %14, %13, %cst {dimension_numbers = #tpu.dot_dimension_numbers<[1], [0], [0], [1], [0, 0, 1, 1], [], []>} : vector<8x12xbf16>, vector<12x16xbf16>, vector<8x16xf32> -> vector<8x16xf32>
    %c0_12 = arith.constant 0 : index
    %c0_13 = arith.constant 0 : index
    %16 = vector.load %arg4[%c0_12, %c0_13] : memref<8x1xf32, #tpu.memory_space<vmem>>, vector<8x1xf32>
    %17 = vector.broadcast %16 : vector<8x1xf32> to vector<8x16xf32>
    %18 = arith.addf %15, %17 : vector<8x16xf32>
    %cst_14 = arith.constant 0.000000e+00 : f32
    %19 = vector.broadcast %cst_14 : f32 to vector<8x16xf32>
    %20 = arith.maximumf %18, %19 : vector<8x16xf32>
    %21 = arith.truncf %20 : vector<8x16xf32> to vector<8x16xbf16>
    %c0_15 = arith.constant 0 : index
    %c128_16 = arith.constant 128 : index
    %22 = vector.load %arg12[%c0_15, %c128_16] : memref<8x144xbf16, #tpu.memory_space<vmem>>, vector<8x16xbf16>
    tpu.vector_store %arg12[%c0_15, %c128_16], %21 {strides = array<i32>} : memref<8x144xbf16, #tpu.memory_space<vmem>>, vector<8x16xbf16>,
    %c0_17 = arith.constant 0 : index
    %c126_18 = arith.constant 126 : index
    %23 = vector.load %arg12[%c0_17, %c126_18] : memref<8x144xbf16, #tpu.memory_space<vmem>>, vector<8x16xbf16>
    %c0_19 = arith.constant 0 : index
    %c127_20 = arith.constant 127 : index
    %24 = vector.load %arg12[%c0_19, %c127_20] : memref<8x144xbf16, #tpu.memory_space<vmem>>, vector<8x16xbf16>
    %c0_21 = arith.constant 0 : index
    %c128_22 = arith.constant 128 : index
    %25 = vector.load %arg12[%c0_21, %c128_22] : memref<8x144xbf16, #tpu.memory_space<vmem>>, vector<8x16xbf16>
    %26 = tpu.concatenate %23, %24, %25 in 0 : vector<8x16xbf16>, vector<8x16xbf16>, vector<8x16xbf16> -> vector<24x16xbf16>
    %c0_23 = arith.constant 0 : index
    %c0_24 = arith.constant 0 : index
    %27 = vector.load %arg5[%c0_23, %c0_24] : memref<8x24xbf16, #tpu.memory_space<vmem>>, vector<8x24xbf16>
    %cst_25 = arith.constant dense<0.000000e+00> : vector<8x16xf32>
    %28 = tpu.matmul %27, %26, %cst_25 {dimension_numbers = #tpu.dot_dimension_numbers<[1], [0], [0], [1], [0, 0, 1, 1], [], []>} : vector<8x24xbf16>, vector<24x16xbf16>, vector<8x16xf32> -> vector<8x16xf32>
    %c0_26 = arith.constant 0 : index
    %c0_27 = arith.constant 0 : index
    %29 = vector.load %arg6[%c0_26, %c0_27] : memref<8x1xf32, #tpu.memory_space<vmem>>, vector<8x1xf32>
    %30 = vector.broadcast %29 : vector<8x1xf32> to vector<8x16xf32>
    %31 = arith.addf %28, %30 : vector<8x16xf32>
    %cst_28 = arith.constant 0.000000e+00 : f32
    %32 = vector.broadcast %cst_28 : f32 to vector<8x16xf32>
    %33 = arith.maximumf %31, %32 : vector<8x16xf32>
    %c0_29 = arith.constant 0 : index
    %c0_30 = arith.constant 0 : index
    %34 = vector.load %arg8[%c0_29, %c0_30] : memref<8x1xf32, #tpu.memory_space<vmem>>, vector<8x1xf32>
    %c0_31 = arith.constant 0 : index
    %c0_32 = arith.constant 0 : index
    %35 = vector.load %arg9[%c0_31, %c0_32] : memref<8x1xf32, #tpu.memory_space<vmem>>, vector<8x1xf32>
    %c0_33 = arith.constant 0 : index
    %c0_34 = arith.constant 0 : index
    %36 = vector.load %arg7[%c0_33, %c0_34] : memref<8x4xbf16, #tpu.memory_space<vmem>>, vector<8x4xbf16>
    %cst_35 = arith.constant dense<0.000000e+00> : vector<8x16xf32>
    %37 = tpu.matmul %36, %8, %cst_35 {dimension_numbers = #tpu.dot_dimension_numbers<[1], [0], [0], [1], [0, 0, 1, 1], [], []>} : vector<8x4xbf16>, vector<4x16xbf16>, vector<8x16xf32> -> vector<8x16xf32>
    %38 = vector.broadcast %34 : vector<8x1xf32> to vector<8x16xf32>
    %39 = arith.mulf %38, %33 : vector<8x16xf32>
    %40 = arith.addf %39, %37 : vector<8x16xf32>
    %41 = vector.broadcast %35 : vector<8x1xf32> to vector<8x16xf32>
    %42 = arith.addf %40, %41 : vector<8x16xf32>
    %cst_36 = arith.constant 0.000000e+00 : f32
    %43 = vector.broadcast %cst_36 : f32 to vector<8x16xf32>
    %44 = arith.maximumf %42, %43 : vector<8x16xf32>
    %c0_37 = arith.constant 0 : index
    %c0_38 = arith.constant 0 : index
    %c0_39 = arith.constant 0 : index
    %45 = vector.load %arg10[%c0_37, %c0_38, %c0_39] : memref<1x8x16xf32, #tpu.memory_space<vmem>>, vector<1x8x16xf32>
    %46 = vector.shape_cast %45 : vector<1x8x16xf32> to vector<8x16xf32>
    %47 = vector.shape_cast %44 : vector<8x16xf32> to vector<1x8x16xf32>
    tpu.vector_store %arg10[%c0_37, %c0_38, %c0_39], %47 {strides = array<i32>} : memref<1x8x16xf32, #tpu.memory_space<vmem>>, vector<1x8x16xf32>,
    return
  }
  func.func @transform_0(%arg0: i32, %arg1: i32) -> (i32, i32, i32) {
    %c0_i32 = arith.constant 0 : i32
    %c0_i32_0 = arith.constant 0 : i32
    return %arg0, %c0_i32, %arg1 : i32, i32, i32
  }
  func.func @transform_1(%arg0: i32, %arg1: i32) -> (i32, i32) {
    %c0_i32 = arith.constant 0 : i32
    %c0_i32_0 = arith.constant 0 : i32
    %c0_i32_1 = arith.constant 0 : i32
    return %c0_i32, %c0_i32_0 : i32, i32
  }
  func.func @transform_2(%arg0: i32, %arg1: i32) -> (i32, i32) {
    %c0_i32 = arith.constant 0 : i32
    %c0_i32_0 = arith.constant 0 : i32
    %c0_i32_1 = arith.constant 0 : i32
    return %c0_i32, %c0_i32_0 : i32, i32
  }
  func.func @transform_3(%arg0: i32, %arg1: i32) -> (i32, i32) {
    %c0_i32 = arith.constant 0 : i32
    %c0_i32_0 = arith.constant 0 : i32
    %c0_i32_1 = arith.constant 0 : i32
    return %c0_i32, %c0_i32_0 : i32, i32
  }
  func.func @transform_4(%arg0: i32, %arg1: i32) -> (i32, i32) {
    %c0_i32 = arith.constant 0 : i32
    %c0_i32_0 = arith.constant 0 : i32
    %c0_i32_1 = arith.constant 0 : i32
    return %c0_i32, %c0_i32_0 : i32, i32
  }
  func.func @transform_5(%arg0: i32, %arg1: i32) -> (i32, i32) {
    %c0_i32 = arith.constant 0 : i32
    %c0_i32_0 = arith.constant 0 : i32
    %c0_i32_1 = arith.constant 0 : i32
    return %c0_i32, %c0_i32_0 : i32, i32
  }
  func.func @transform_6(%arg0: i32, %arg1: i32) -> (i32, i32) {
    %c0_i32 = arith.constant 0 : i32
    %c0_i32_0 = arith.constant 0 : i32
    %c0_i32_1 = arith.constant 0 : i32
    return %c0_i32, %c0_i32_0 : i32, i32
  }
  func.func @transform_7(%arg0: i32, %arg1: i32) -> (i32, i32) {
    %c0_i32 = arith.constant 0 : i32
    %c0_i32_0 = arith.constant 0 : i32
    %c0_i32_1 = arith.constant 0 : i32
    return %c0_i32, %c0_i32_0 : i32, i32
  }
  func.func @transform_8(%arg0: i32, %arg1: i32) -> (i32, i32, i32) {
    %c0_i32 = arith.constant 0 : i32
    %c0_i32_0 = arith.constant 0 : i32
    return %arg0, %c0_i32, %arg1 : i32, i32, i32
  }
}

</mosaic_0001>

<llo_original>
// kernel: tpu_custom_call.1
$region0: #{tpu_custom_call.1}
  #allocation0 [shape = 'u32[]', space=smem, size = 0x4, offset = 0x4, fixed_abs, tag = 'smem constant byte address 0x4 - core index']
  #allocation1 [shape = 'u32[144,128]{1,0:T(1,128)}', space=vmem, size = 0x12000, scoped, tag = 'internal scratch']
  #allocation2 [shape = 'bf16[4,144]{1,0:T(4,128)(2,1)}', space=vmem, size = 0x800, scoped, tag = 'scratch operand']
  #allocation3 [shape = 'bf16[8,144]{1,0:T(8,128)(2,1)}', space=vmem, size = 0x1000, scoped, tag = 'scratch operand']
  %s0 = inlined_call_operand.vmem [shape: f32[2,4,16], index: 0, kind: input, shape index: {}]
  %s1 = inlined_call_operand.vmem [shape: bf16[8,12], index: 1, kind: input, shape index: {}]
  %s2 = inlined_call_operand.vmem [shape: f32[8,1], index: 2, kind: input, shape index: {}]
  %s3 = inlined_call_operand.vmem [shape: bf16[8,24], index: 3, kind: input, shape index: {}]
  %s4 = inlined_call_operand.vmem [shape: f32[8,1], index: 4, kind: input, shape index: {}]
  %s5 = inlined_call_operand.vmem [shape: bf16[8,4], index: 5, kind: input, shape index: {}]
  %s6 = inlined_call_operand.vmem [shape: f32[8,1], index: 6, kind: input, shape index: {}]
  %s7 = inlined_call_operand.vmem [shape: f32[8,1], index: 7, kind: input, shape index: {}]
  %s8 = inlined_call_operand.hbm [shape: f32[2,8,16], index: 8, kind: output, shape index: {}]
  %s9 = sld [smem:[#allocation0]]
  $region73: #{tpu_custom_call.1} parent=0
    _
  %s11 = ssub.s32 1, %s9
  %s12 = scalar_select 0, %s11, %s9
  $region1: #{tpu_custom_call.1} parent=0
    #allocation4 [shape = 'u8[8192]{0}', space=vmem, size = 0x2000, scoped, tag = 'output window, operand 0']
    #allocation5 [shape = 's32[2]{0}', space=sflag, size = 0x8, scoped, tag = 'scoped memory for tpu_custom_call.1']
    %13 = vsyncpa [#allocation5], 0
    %s14 = scalar_lea.sflag [#allocation5], 1
    %15 = vsyncpa %s14, 0
    loop: start=0, step=1, limit=4
    $region2: #{tpu_custom_call.1} parent=1 // loop_pre_header
      _
    $region3: #{tpu_custom_call.1} parent=1 // loop_header
      %s17 = sphi 0, %s21
      %p18 = scmp.ge.s32.totalorder %s17, 4
      %s24 = sphi 0, %s36
      %s25 = sphi 0, %s32
      %s26 = sphi 0, %s24
      %s27 = sphi 0, %s25
      %s28 = sphi 0, %s26
      %s29 = sphi 0, %s27
      %s41 = sphi 0, %s43
      %s44 = sphi 0, %s41
      %s45 = sphi 0, %s44
      %s61 = sphi 0, %s45
      %s65 = sphi 0, %s65
      %s67 = sphi 0, %s65
      %s68 = sphi 0, %s67
      %s82 = sphi 0, %s68
      %s86 = sphi 0, %s86
      %s88 = sphi 0, %s86
      %s89 = sphi 0, %s88
      %s103 = sphi 0, %s89
      %s107 = sphi 0, %s107
      %s109 = sphi 0, %s107
      %s110 = sphi 0, %s109
      %s124 = sphi 0, %s110
      %s128 = sphi 0, %s128
      %s130 = sphi 0, %s128
      %s131 = sphi 0, %s130
      %s145 = sphi 0, %s131
      %s149 = sphi 0, %s149
      %s151 = sphi 0, %s149
      %s152 = sphi 0, %s151
      %s166 = sphi 0, %s152
      %s170 = sphi 0, %s170
      %s172 = sphi 0, %s170
      %s173 = sphi 0, %s172
      %s187 = sphi 0, %s173
      %s191 = sphi 0, %s191
      %s193 = sphi 0, %s191
      %s194 = sphi 0, %s193
      %s208 = sphi 0, %s194
      %s216 = sphi 0, %s218
      %s219 = sphi 0, %s216
      %s220 = sphi 0, %s219
      %s236 = sphi 0, %s220
    $region4: #{tpu_custom_call.1} parent=1 // loop_header_branch
      %20 = sbr.rel (%p18) target = $region8
    $region5: #{tpu_custom_call.1} parent=1 // loop_body
      %s22 = ssub.s32 %s17, 1
      %s23 = ssub.s32 %s17, 2
      %s30 = sadd.s32 1, %s25
      %p31 = scmp.ge.s32.totalorder %s30, 1
      %s32 = scalar_select %p31, 0, %s30
      %s33 = sadd.s32 1, %s24
      %s34 = scalar_select %p31, %s33, %s24
      %p35 = scmp.ge.s32.totalorder %s34, 2
      %s36 = scalar_select %p35, 0, %s34
      %s37 = ssub.s32 %s24, %s36
      %s38 = ssub.s32 %s25, %s32
      %s39 = sor.u32 %s37, %s38
      %p40 = scmp.eq.s32.totalorder %s39, 0
      %s42 = sadd.s32 %s41, 1
      %s43 = scalar_select %p40, %s41, %s42
      %p46 = pneg %p40
      %p47 = scmp.eq.s32.totalorder %s17, 1
      %p48 = por %p46, %p47
      %p49 = scmp.ne.s32.totalorder %s41, %s44
      %p50 = scmp.eq.s32.totalorder %s17, 0
      %p51 = por %p49, %p50
      %p52 = scmp.ne.s32.totalorder %s41, %s44
      %p53 = scmp.eq.s32.totalorder %s22, 1
      %p54 = por %p52, %p53
      %p55 = scmp.ne.s32.totalorder %s44, %s45
      %p56 = scmp.eq.s32.totalorder %s22, 0
      %p57 = por %p55, %p56
      %p58 = scmp.ne.s32.totalorder %s44, %s45
      %p59 = scmp.eq.s32.totalorder %s23, 1
      %p60 = por %p58, %p59
      %p62 = scmp.ne.s32.totalorder %s45, %s61
      %p63 = scmp.eq.s32.totalorder %s23, 0
      %p64 = por %p62, %p63
      %s66 = sadd.s32 %s65, 1
      %p69 = scmp.eq.s32.totalorder %s17, 1
      %p70 = scmp.ne.s32.totalorder %s65, %s67
      %p71 = scmp.eq.s32.totalorder %s17, 0
      %p72 = por %p70, %p71
      %p73 = scmp.ne.s32.totalorder %s65, %s67
      %p74 = scmp.eq.s32.totalorder %s22, 1
      %p75 = por %p73, %p74
      %p76 = scmp.ne.s32.totalorder %s67, %s68
      %p77 = scmp.eq.s32.totalorder %s22, 0
      %p78 = por %p76, %p77
      %p79 = scmp.ne.s32.totalorder %s67, %s68
      %p80 = scmp.eq.s32.totalorder %s23, 1
      %p81 = por %p79, %p80
      %p83 = scmp.ne.s32.totalorder %s68, %s82
      %p84 = scmp.eq.s32.totalorder %s23, 0
      %p85 = por %p83, %p84
      %s87 = sadd.s32 %s86, 1
      %p90 = scmp.eq.s32.totalorder %s17, 1
      %p91 = scmp.ne.s32.totalorder %s86, %s88
      %p92 = scmp.eq.s32.totalorder %s17, 0
      %p93 = por %p91, %p92
      %p94 = scmp.ne.s32.totalorder %s86, %s88
      %p95 = scmp.eq.s32.totalorder %s22, 1
      %p96 = por %p94, %p95
      %p97 = scmp.ne.s32.totalorder %s88, %s89
      %p98 = scmp.eq.s32.totalorder %s22, 0
      %p99 = por %p97, %p98
      %p100 = scmp.ne.s32.totalorder %s88, %s89
      %p101 = scmp.eq.s32.totalorder %s23, 1
      %p102 = por %p100, %p101
      %p104 = scmp.ne.s32.totalorder %s89, %s103
      %p105 = scmp.eq.s32.totalorder %s23, 0
      %p106 = por %p104, %p105
      %s108 = sadd.s32 %s107, 1
      %p111 = scmp.eq.s32.totalorder %s17, 1
      %p112 = scmp.ne.s32.totalorder %s107, %s109
      %p113 = scmp.eq.s32.totalorder %s17, 0
      %p114 = por %p112, %p113
      %p115 = scmp.ne.s32.totalorder %s107, %s109
      %p116 = scmp.eq.s32.totalorder %s22, 1
      %p117 = por %p115, %p116
      %p118 = scmp.ne.s32.totalorder %s109, %s110
      %p119 = scmp.eq.s32.totalorder %s22, 0
      %p120 = por %p118, %p119
      %p121 = scmp.ne.s32.totalorder %s109, %s110
      %p122 = scmp.eq.s32.totalorder %s23, 1
      %p123 = por %p121, %p122
      %p125 = scmp.ne.s32.totalorder %s110, %s124
      %p126 = scmp.eq.s32.totalorder %s23, 0
      %p127 = por %p125, %p126
      %s129 = sadd.s32 %s128, 1
      %p132 = scmp.eq.s32.totalorder %s17, 1
      %p133 = scmp.ne.s32.totalorder %s128, %s130
      %p134 = scmp.eq.s32.totalorder %s17, 0
      %p135 = por %p133, %p134
      %p136 = scmp.ne.s32.totalorder %s128, %s130
      %p137 = scmp.eq.s32.totalorder %s22, 1
      %p138 = por %p136, %p137
      %p139 = scmp.ne.s32.totalorder %s130, %s131
      %p140 = scmp.eq.s32.totalorder %s22, 0
      %p141 = por %p139, %p140
      %p142 = scmp.ne.s32.totalorder %s130, %s131
      %p143 = scmp.eq.s32.totalorder %s23, 1
      %p144 = por %p142, %p143
      %p146 = scmp.ne.s32.totalorder %s131, %s145
      %p147 = scmp.eq.s32.totalorder %s23, 0
      %p148 = por %p146, %p147
      %s150 = sadd.s32 %s149, 1
      %p153 = scmp.eq.s32.totalorder %s17, 1
      %p154 = scmp.ne.s32.totalorder %s149, %s151
      %p155 = scmp.eq.s32.totalorder %s17, 0
      %p156 = por %p154, %p155
      %p157 = scmp.ne.s32.totalorder %s149, %s151
      %p158 = scmp.eq.s32.totalorder %s22, 1
      %p159 = por %p157, %p158
      %p160 = scmp.ne.s32.totalorder %s151, %s152
      %p161 = scmp.eq.s32.totalorder %s22, 0
      %p162 = por %p160, %p161
      %p163 = scmp.ne.s32.totalorder %s151, %s152
      %p164 = scmp.eq.s32.totalorder %s23, 1
      %p165 = por %p163, %p164
      %p167 = scmp.ne.s32.totalorder %s152, %s166
      %p168 = scmp.eq.s32.totalorder %s23, 0
      %p169 = por %p167, %p168
      %s171 = sadd.s32 %s170, 1
      %p174 = scmp.eq.s32.totalorder %s17, 1
      %p175 = scmp.ne.s32.totalorder %s170, %s172
      %p176 = scmp.eq.s32.totalorder %s17, 0
      %p177 = por %p175, %p176
      %p178 = scmp.ne.s32.totalorder %s170, %s172
      %p179 = scmp.eq.s32.totalorder %s22, 1
      %p180 = por %p178, %p179
      %p181 = scmp.ne.s32.totalorder %s172, %s173
      %p182 = scmp.eq.s32.totalorder %s22, 0
      %p183 = por %p181, %p182
      %p184 = scmp.ne.s32.totalorder %s172, %s173
      %p185 = scmp.eq.s32.totalorder %s23, 1
      %p186 = por %p184, %p185
      %p188 = scmp.ne.s32.totalorder %s173, %s187
      %p189 = scmp.eq.s32.totalorder %s23, 0
      %p190 = por %p188, %p189
      %s192 = sadd.s32 %s191, 1
      %p195 = scmp.eq.s32.totalorder %s17, 1
      %p196 = scmp.ne.s32.totalorder %s191, %s193
      %p197 = scmp.eq.s32.totalorder %s17, 0
      %p198 = por %p196, %p197
      %p199 = scmp.ne.s32.totalorder %s191, %s193
      %p200 = scmp.eq.s32.totalorder %s22, 1
      %p201 = por %p199, %p200
      %p202 = scmp.ne.s32.totalorder %s193, %s194
      %p203 = scmp.eq.s32.totalorder %s22, 0
      %p204 = por %p202, %p203
      %p205 = scmp.ne.s32.totalorder %s193, %s194
      %p206 = scmp.eq.s32.totalorder %s23, 1
      %p207 = por %p205, %p206
      %p209 = scmp.ne.s32.totalorder %s194, %s208
      %p210 = scmp.eq.s32.totalorder %s23, 0
      %p211 = por %p209, %p210
      %s212 = ssub.s32 %s24, %s36
      %s213 = ssub.s32 %s25, %s32
      %s214 = sor.u32 %s212, %s213
      %p215 = scmp.eq.s32.totalorder %s214, 0
      %s217 = sadd.s32 %s216, 1
      %s218 = scalar_select %p215, %s216, %s217
      %p221 = pneg %p215
      %p222 = scmp.eq.s32.totalorder %s17, 1
      %p223 = por %p221, %p222
      %p224 = scmp.ne.s32.totalorder %s216, %s219
      %p225 = scmp.eq.s32.totalorder %s17, 0
      %p226 = por %p224, %p225
      %p227 = scmp.ne.s32.totalorder %s216, %s219
      %p228 = scmp.eq.s32.totalorder %s22, 1
      %p229 = por %p227, %p228
      %p230 = scmp.ne.s32.totalorder %s219, %s220
      %p231 = scmp.eq.s32.totalorder %s22, 0
      %p232 = por %p230, %p231
      %p233 = scmp.ne.s32.totalorder %s219, %s220
      %p234 = scmp.eq.s32.totalorder %s23, 1
      %p235 = por %p233, %p234
      %p237 = scmp.ne.s32.totalorder %s220, %s236
      %p238 = scmp.eq.s32.totalorder %s23, 0
      %p239 = por %p237, %p238
      %p240 = scmp.le.s32.totalorder 1, %s17
      %p241 = scmp.lt.s32.totalorder %s17, 3
      %p242 = pnand %p240, %p241
      %p243 = pneg %p242
      // Predicated region
      $region9: #{tpu_custom_call.1} parent=5 // pred_check
        _
      $region10: #{tpu_custom_call.1} parent=5 // pred_check_branch
        %245 = sbr.rel (%p242) target = $region12
      $region11: #{tpu_custom_call.1} parent=5 // pred_region
        %s246 = ssub.s32 %s17, 1
        // Predicated region
        $region13: #{tpu_custom_call.1} parent=11 // pred_check
          %p247 = pneg %p78
        $region14: #{tpu_custom_call.1} parent=11 // pred_check_branch
          %249 = sbr.rel (%p247) target = $region16
        $region15: #{tpu_custom_call.1} parent=11 // pred_region
          _
        $region16: #{tpu_custom_call.1} parent=11 // pred_fallthru
          _
        // Predicated region
        $region17: #{tpu_custom_call.1} parent=11 // pred_check
          %p250 = pneg %p99
        $region18: #{tpu_custom_call.1} parent=11 // pred_check_branch
          %252 = sbr.rel (%p250) target = $region20
        $region19: #{tpu_custom_call.1} parent=11 // pred_region
          _
        $region20: #{tpu_custom_call.1} parent=11 // pred_fallthru
          _
        // Predicated region
        $region21: #{tpu_custom_call.1} parent=11 // pred_check
          %p253 = pneg %p120
        $region22: #{tpu_custom_call.1} parent=11 // pred_check_branch
          %255 = sbr.rel (%p253) target = $region24
        $region23: #{tpu_custom_call.1} parent=11 // pred_region
          _
        $region24: #{tpu_custom_call.1} parent=11 // pred_fallthru
          _
        // Predicated region
        $region25: #{tpu_custom_call.1} parent=11 // pred_check
          %p256 = pneg %p141
        $region26: #{tpu_custom_call.1} parent=11 // pred_check_branch
          %258 = sbr.rel (%p256) target = $region28
        $region27: #{tpu_custom_call.1} parent=11 // pred_region
          _
        $region28: #{tpu_custom_call.1} parent=11 // pred_fallthru
          _
        // Predicated region
        $region29: #{tpu_custom_call.1} parent=11 // pred_check
          %p259 = pneg %p162
        $region30: #{tpu_custom_call.1} parent=11 // pred_check_branch
          %261 = sbr.rel (%p259) target = $region32
        $region31: #{tpu_custom_call.1} parent=11 // pred_region
          _
        $region32: #{tpu_custom_call.1} parent=11 // pred_fallthru
          _
        // Predicated region
        $region33: #{tpu_custom_call.1} parent=11 // pred_check
          %p262 = pneg %p183
        $region34: #{tpu_custom_call.1} parent=11 // pred_check_branch
          %264 = sbr.rel (%p262) target = $region36
        $region35: #{tpu_custom_call.1} parent=11 // pred_region
          _
        $region36: #{tpu_custom_call.1} parent=11 // pred_fallthru
          _
        // Predicated region
        $region37: #{tpu_custom_call.1} parent=11 // pred_check
          %p265 = pneg %p204
        $region38: #{tpu_custom_call.1} parent=11 // pred_check_branch
          %267 = sbr.rel (%p265) target = $region40
        $region39: #{tpu_custom_call.1} parent=11 // pred_region
          _
        $region40: #{tpu_custom_call.1} parent=11 // pred_fallthru
          _
      $region12: #{tpu_custom_call.1} parent=5 // pred_fallthru
        _
      %p268 = scmp.lt.s32.totalorder %s17, 2
      // Predicated region
      $region41: #{tpu_custom_call.1} parent=5 // pred_check
        %p269 = pneg %p268
      $region42: #{tpu_custom_call.1} parent=5 // pred_check_branch
        %271 = sbr.rel (%p269) target = $region44
      $region43: #{tpu_custom_call.1} parent=5 // pred_region
        // Predicated region
        $region45: #{tpu_custom_call.1} parent=43 // pred_check
          %p272 = pneg %p51
        $region46: #{tpu_custom_call.1} parent=43 // pred_check_branch
          %274 = sbr.rel (%p272) target = $region48
        $region47: #{tpu_custom_call.1} parent=43 // pred_region
          %p275 = scmp.lt.s32.totalorder %s24, 1
          %s276 = scalar_select %p275, %s24, 1
          %p277 = scmp.lt.s32.totalorder %s25, 0
          %s278 = scalar_select %p277, %s25, 0
          %s279 = sadd.s32 %s278, %s276
          %s280 = smul.addr %s279, 4
          %s281 = scalar_lea.vmem %s0, %s280
        $region48: #{tpu_custom_call.1} parent=43 // pred_fallthru
          _
      $region44: #{tpu_custom_call.1} parent=5 // pred_fallthru
        _
      %p282 = scmp.le.s32.totalorder 1, %s17
      %p283 = scmp.lt.s32.totalorder %s17, 3
      %p284 = pnand %p282, %p283
      %p285 = pneg %p284
      // Predicated region
      $region49: #{tpu_custom_call.1} parent=5 // pred_check
        _
      $region50: #{tpu_custom_call.1} parent=5 // pred_check_branch
        %287 = sbr.rel (%p284) target = $region52
      $region51: #{tpu_custom_call.1} parent=5 // pred_region
        %s288 = ssub.s32 %s17, 1
        %p289 = scmp.lt.s32.totalorder %s26, 1
        %s290 = scalar_select %p289, %s26, 1
        %p291 = scmp.lt.s32.totalorder %s27, 0
        %s292 = scalar_select %p291, %s27, 0
        %s293 = sadd.s32 %s292, %s290
        %s294 = smul.addr %s293, 4
        %s295 = scalar_lea.vmem %s0, %s294
        %p296 = pneg %p57
        %p297 = pneg %p54
        %p298 = pneg %p78
        %p299 = pneg %p75
        %p300 = pneg %p99
        %p301 = pneg %p96
        %p302 = pneg %p120
        %p303 = pneg %p117
        %p304 = pneg %p141
        %p305 = pneg %p138
        %p306 = pneg %p162
        %p307 = pneg %p159
        %p308 = pneg %p183
        %p309 = pneg %p180
        %p310 = pneg %p204
        %p311 = pneg %p201
        %p312 = pneg %p232
        %p313 = pneg %p229
        %s314 = sand.u32 %s219, 1
        %s315 = scalar_lea.sflag [#allocation5], %s314
        %s316 = sand.u32 %s219, 1
        %s317 = smul.addr %s316, 8
        %s318 = scalar_lea.vmem [#allocation4], %s317
        %p319 = scmp.lt.s32.totalorder %s26, 1
        %s320 = scalar_select %p319, %s26, 1
        %p321 = scmp.lt.s32.totalorder %s27, 0
        %s322 = scalar_select %p321, %s27, 0
        %s323 = sadd.s32 %s322, %s320
        %s324 = smul.addr %s323, 4
        %s325 = scalar_lea.vmem %s0, %s324
        %p327 = scmp.eq.s32.totalorder %s27, 0
        // Predicated region
        $region53: #{tpu_custom_call.1} parent=51 // pred_check
          %p328 = pneg %p327
        $region54: #{tpu_custom_call.1} parent=51 // pred_check_branch
          %330 = sbr.rel (%p328) target = $region56
        $region55: #{tpu_custom_call.1} parent=51 // pred_region
          %vm331 = vcmask 1042416
          %332 = vst.msk [vmem:[#allocation2] sm:$0x3] %vm331, 0
          %vm333 = vcmask 1044464
          %334 = vst.msk [vmem:[#allocation3] sm:$0xf] %vm333, 0
        $region56: #{tpu_custom_call.1} parent=51 // pred_fallthru
          _
        %p335 = scmp.gt.s32.totalorder %s27, 0
        // Predicated region
        $region57: #{tpu_custom_call.1} parent=51 // pred_check
          %p336 = pneg %p335
        $region58: #{tpu_custom_call.1} parent=51 // pred_check_branch
          %338 = sbr.rel (%p336) target = $region60
        $region59: #{tpu_custom_call.1} parent=51 // pred_region
          %v339 = vld [vmem:[#allocation2 + $0x2] sm:$0x3]
          %341 = vrot.lane.b32.xlu0 %v339, 112
          %v342 = vpop.permute.xlu0 %341
          %vm344 = vcmask 1042416
          %345 = vst.msk [vmem:[#allocation2] sm:$0x3] %vm344, %v342
          %v346 = vld [vmem:[#allocation3 + $0x4] sm:$0xf]
          %348 = vrot.lane.b32.xlu0 %v346, 112
          %v349 = vpop.permute.xlu0 %348
          %vm351 = vcmask 1044464
          %352 = vst.msk [vmem:[#allocation3] sm:$0xf] %vm351, %v349
        $region60: #{tpu_custom_call.1} parent=51 // pred_fallthru
          _
        %v353 = vld [vmem:[%s325] sm:$0xf]
        %v354 = vpack.c.bf16 %v353, %v353
        %vm355 = vcmask 123904
        %356 = vst.msk [vmem:[#allocation2 + $0x2] sm:$0x3] %vm355, %v354
        %v357 = vld [vmem:[#allocation2] sm:$0xf]
        %v358 = vld [vmem:[#allocation2 + $0x2] sm:$0x3]
        %v361 = vunpack.c.l.s4 1983009808
        %v362 = vunpack.c.0.s8 %v361
        %v363 = vlaneseq
        %v364 = vshrl.u32 %v363, 7
        %v365 = vsub.s32 %v362, %v364
        %v366 = vrot.slane %v357, %v365
        %v367 = vcombine.high %v366, %v366
        %v368 = vcombine.low %v357, %v357
        %v370 = vunpack.c.l.s4 1983009808
        %v371 = vunpack.c.0.s8 %v370
        %v372 = vlaneseq
        %v373 = vshrl.u32 %v372, 7
        %v374 = vsub.s32 %v371, %v373
        %v375 = vrot.slane %v368, %v374
        %v376 = vcombine.high %v375, %v375
        %377 = vrot.lane.b32.xlu0 %v375, 127
        %v378 = vpop.permute.xlu0 %377
        %379 = vrot.lane.b32.xlu0 %v376, 127
        %v380 = vpop.permute.xlu0 %379
        %vm381 = vcmask 1039360
        %v382 = vsel %vm381, %v378, %v380
        %v385 = vunpack.c.l.s4 1983009808
        %v386 = vunpack.c.0.s8 %v385
        %v387 = vlaneseq
        %v388 = vshrl.u32 %v387, 7
        %v389 = vsub.s32 %v386, %v388
        %v390 = vrot.slane %v358, %v389
        %v391 = vcombine.low %v390, %v390
        %392 = vrot.lane.b32.xlu0 %v391, 126
        %v393 = vpop.permute.xlu0 %392
        %vm394 = vcmask 1041408
        %v397 = vsel %vm394, %v366, %v382
        %v400 = vsel %vm394, %v367, %v380
        %vm401 = vcmask 1043456
        %v403 = vsel %vm401, %v397, %v393
        %v404 = vsel %vm401, %v400, %v393
        %v405 = vld [vmem:[%s1] sm:$0xf]
        %v406 = vld [vmem:[%s2] sm:$0xff]
        %408 = vset.pattern.permute.xlu0 0
        %409 = vperm.xlu0 %408, %v406
        %v410 = vpop.permute.xlu0 %409
        %414 = vrot.lane.b32.xlu0 %v403, 2
        %v415 = vpop.permute.xlu0 %414
        %416 = vrot.lane.b32.xlu0 %v404, 2
        %v417 = vpop.permute.xlu0 %416
        %vm418 = vcmask 15360
        %v419 = vsel %vm418, %v415, %v417
        %vm420 = vcmask 97280
        %v422 = vsel %vm420, %v405, 0
        %vm424 = vcmask 1045504
        %v426 = vsel %vm424, %v419, 0
        %428 = vmatprep.subr.bf16.mxu0 0
        %429 = vmatpush1.bf16.msra.mxu0 %v426
        %430 = vmatprep.subr.bf16.mxu0 0
        %431 = vmatpush1.bf16.msra.mxu0 0
        %432 = vmatprep.subr.bf16.mxu0 0
        %433 = vmatpush1.bf16.msra.mxu0 0
        %434 = vmatprep.subr.bf16.mxu0 0
        %435 = vmatpush1.bf16.msra.mxu0 0
        %436 = vmatprep.subr.bf16.mxu0 0
        %437 = vmatpush1.bf16.msra.mxu0 0
        %438 = vmatprep.subr.bf16.mxu0 0
        %439 = vmatpush1.bf16.msra.mxu0 0
        %440 = vmatprep.subr.bf16.mxu0 0
        %441 = vmatpush1.bf16.msra.mxu0 0
        %442 = vmatprep.subr.bf16.mxu0 0
        %443 = vmatpush1.bf16.msra.mxu0 0
        %444 = vmatprep.subr.bf16.mxu0 0
        %445 = vmatpush1.bf16.msra.mxu0 0
        %446 = vmatprep.subr.bf16.mxu0 0
        %447 = vmatpush1.bf16.msra.mxu0 0
        %448 = vmatprep.subr.bf16.mxu0 0
        %449 = vmatpush1.bf16.msra.mxu0 0
        %450 = vmatprep.subr.bf16.mxu0 0
        %451 = vmatpush1.bf16.msra.mxu0 0
        %452 = vmatprep.subr.bf16.mxu0 0
        %453 = vmatpush1.bf16.msra.mxu0 0
        %454 = vmatprep.subr.bf16.mxu0 0
        %455 = vmatpush1.bf16.msra.mxu0 0
        %456 = vmatprep.subr.bf16.mxu0 0
        %457 = vmatpush1.bf16.msra.mxu0 0
        %458 = vmatprep.subr.bf16.mxu0 0
        %459 = vmatpush1.bf16.msra.mxu0 0
        %460 = vmatprep.mubr.bf16.mxu0 0
        %461 = vmatmul.mubr.bf16.gmra.mrb[0].mxu0 %v422
        %v462 = vpop.f32.mrb[0].mxu0
        %v463 = vadd.f32 %v410, %v462
        %v464 = vpop.f32.mrb[0].mxu0
        %v465 = vpop.f32.mrb[0].mxu0
        %v466 = vpop.f32.mrb[0].mxu0
        %467 = vdwg.mxu0
        %v468 = vmax.f32 %v463, 0.0
        %v469 = vpack.c.bf16 %v468, %v468
        %vm470 = vcmask 125952
        %471 = vst.msk [vmem:[#allocation3 + $0x4] sm:$0xf] %vm470, %v469
        %v472 = vld [vmem:[#allocation3] sm:$0xff]
        %v473 = vld [vmem:[#allocation3 + $0x4] sm:$0xf]
        %v475 = vunpack.c.l.b16 %v472
        %v476 = vunpack.c.h.b16 %v472
        %v477 = vpack.c.b16 %v475, %v475
        %v478 = vpack.c.b16 %v476, %v476
        %479 = vrot.lane.b32.xlu0 %v477, 127
        %v480 = vpop.permute.xlu0 %479
        %481 = vrot.lane.b32.xlu0 %v478, 127
        %v482 = vpop.permute.xlu0 %481
        %v483 = vsel %vm381, %v480, %v482
        %v485 = vunpack.c.l.b16 %v473
        %v486 = vpack.c.b16 %v485, %v485
        %487 = vrot.lane.b32.xlu0 %v486, 126
        %v488 = vpop.permute.xlu0 %487
        %v491 = vsel %vm401, %v477, %v483
        %v494 = vsel %vm401, %v478, %v482
        %v495 = vld [vmem:[%s3] sm:$0xf]
        %v496 = vld [vmem:[%s4] sm:$0xff]
        %498 = vset.pattern.permute.xlu0 0
        %499 = vperm.xlu0 %498, %v496
        %v500 = vpop.permute.xlu0 %499
        %504 = vrot.lane.b32.xlu0 %v491, 2
        %v505 = vpop.permute.xlu0 %504
        %506 = vrot.lane.b32.xlu0 %v494, 2
        %v507 = vpop.permute.xlu0 %506
        %508 = vrot.lane.b32.xlu0 %v488, 2
        %v509 = vpop.permute.xlu0 %508
        %v510 = vsel %vm418, %v505, %v507
        %vm512 = vcmask 195584
        %v514 = vsel %vm512, %v495, 0
        %v517 = vsel %vm401, %v509, 0
        %519 = vmatprep.subr.bf16.mxu0 0
        %520 = vmatpush1.bf16.msra.mxu0 %v510
        %521 = vmatprep.subr.bf16.mxu0 0
        %522 = vmatpush1.bf16.msra.mxu0 %v517
        %523 = vmatprep.subr.bf16.mxu0 0
        %524 = vmatpush1.bf16.msra.mxu0 0
        %525 = vmatprep.subr.bf16.mxu0 0
        %526 = vmatpush1.bf16.msra.mxu0 0
        %527 = vmatprep.subr.bf16.mxu0 0
        %528 = vmatpush1.bf16.msra.mxu0 0
        %529 = vmatprep.subr.bf16.mxu0 0
        %530 = vmatpush1.bf16.msra.mxu0 0
        %531 = vmatprep.subr.bf16.mxu0 0
        %532 = vmatpush1.bf16.msra.mxu0 0
        %533 = vmatprep.subr.bf16.mxu0 0
        %534 = vmatpush1.bf16.msra.mxu0 0
        %535 = vmatprep.subr.bf16.mxu0 0
        %536 = vmatpush1.bf16.msra.mxu0 0
        %537 = vmatprep.subr.bf16.mxu0 0
        %538 = vmatpush1.bf16.msra.mxu0 0
        %539 = vmatprep.subr.bf16.mxu0 0
        %540 = vmatpush1.bf16.msra.mxu0 0
        %541 = vmatprep.subr.bf16.mxu0 0
        %542 = vmatpush1.bf16.msra.mxu0 0
        %543 = vmatprep.subr.bf16.mxu0 0
        %544 = vmatpush1.bf16.msra.mxu0 0
        %545 = vmatprep.subr.bf16.mxu0 0
        %546 = vmatpush1.bf16.msra.mxu0 0
        %547 = vmatprep.subr.bf16.mxu0 0
        %548 = vmatpush1.bf16.msra.mxu0 0
        %549 = vmatprep.subr.bf16.mxu0 0
        %550 = vmatpush1.bf16.msra.mxu0 0
        %551 = vmatprep.mubr.bf16.mxu0 0
        %552 = vmatmul.mubr.bf16.gmra.mrb[0].mxu0 %v514
        %v553 = vpop.f32.mrb[0].mxu0
        %v554 = vadd.f32 %v500, %v553
        %v555 = vpop.f32.mrb[0].mxu0
        %v556 = vpop.f32.mrb[0].mxu0
        %v557 = vpop.f32.mrb[0].mxu0
        %558 = vdwg.mxu0
        %v559 = vmax.f32 %v554, 0.0
        %v560 = vld [vmem:[%s6] sm:$0xff]
        %v561 = vld [vmem:[%s7] sm:$0xff]
        %v562 = vld [vmem:[%s5] sm:$0xf]
        %vm563 = vcmask 31744
        %v565 = vsel %vm563, %v562, 0
        %v568 = vsel %vm394, %v354, 0
        %570 = vmatprep.subr.bf16.mxu0 0
        %571 = vmatpush1.bf16.msra.mxu0 %v568
        %572 = vmatprep.subr.bf16.mxu0 0
        %573 = vmatpush1.bf16.msra.mxu0 0
        %574 = vmatprep.subr.bf16.mxu0 0
        %575 = vmatpush1.bf16.msra.mxu0 0
        %576 = vmatprep.subr.bf16.mxu0 0
        %577 = vmatpush1.bf16.msra.mxu0 0
        %578 = vmatprep.subr.bf16.mxu0 0
        %579 = vmatpush1.bf16.msra.mxu0 0
        %580 = vmatprep.subr.bf16.mxu0 0
        %581 = vmatpush1.bf16.msra.mxu0 0
        %582 = vmatprep.subr.bf16.mxu0 0
        %583 = vmatpush1.bf16.msra.mxu0 0
        %584 = vmatprep.subr.bf16.mxu0 0
        %585 = vmatpush1.bf16.msra.mxu0 0
        %586 = vmatprep.subr.bf16.mxu0 0
        %587 = vmatpush1.bf16.msra.mxu0 0
        %588 = vmatprep.subr.bf16.mxu0 0
        %589 = vmatpush1.bf16.msra.mxu0 0
        %590 = vmatprep.subr.bf16.mxu0 0
        %591 = vmatpush1.bf16.msra.mxu0 0
        %592 = vmatprep.subr.bf16.mxu0 0
        %593 = vmatpush1.bf16.msra.mxu0 0
        %594 = vmatprep.subr.bf16.mxu0 0
        %595 = vmatpush1.bf16.msra.mxu0 0
        %596 = vmatprep.subr.bf16.mxu0 0
        %597 = vmatpush1.bf16.msra.mxu0 0
        %598 = vmatprep.subr.bf16.mxu0 0
        %599 = vmatpush1.bf16.msra.mxu0 0
        %600 = vmatprep.subr.bf16.mxu0 0
        %601 = vmatpush1.bf16.msra.mxu0 0
        %602 = vmatprep.mubr.bf16.mxu0 0
        %603 = vmatmul.mubr.bf16.gmra.mrb[0].mxu0 %v565
        %v604 = vpop.f32.mrb[0].mxu0
        %v605 = vadd.f32 0.0, %v604
        %v606 = vpop.f32.mrb[0].mxu0
        %v607 = vpop.f32.mrb[0].mxu0
        %v608 = vpop.f32.mrb[0].mxu0
        %609 = vdwg.mxu0
        %611 = vset.pattern.permute.xlu0 0
        %612 = vperm.xlu0 %611, %v560
        %v613 = vpop.permute.xlu0 %612
        %v615 = vmul.f32 %v613, %v559
        %v616 = vadd.f32 %v615, %v605
        %618 = vset.pattern.permute.xlu0 0
        %619 = vperm.xlu0 %618, %v561
        %v620 = vpop.permute.xlu0 %619
        %v622 = vadd.f32 %v616, %v620
        %v623 = vmax.f32 %v622, 0.0
        %vm624 = vcmask 130048
        %625 = vst.msk [vmem:[%s318] sm:$0xff] %vm624, %v623
        %s626 = sand.u32 %s219, 1
        %s627 = scalar_lea.sflag [#allocation5], %s626
        %s628 = sand.u32 %s219, 1
        %s629 = smul.addr %s628, 8
        %s630 = scalar_lea.vmem [#allocation4], %s629
        // Predicated region
        $region61: #{tpu_custom_call.1} parent=51 // pred_check
          %p631 = pneg %p229
        $region62: #{tpu_custom_call.1} parent=51 // pred_check_branch
          %633 = sbr.rel (%p631) target = $region64
        $region63: #{tpu_custom_call.1} parent=51 // pred_region
          %s635 = ssub.s32 128, 128
          %636 = vsyncadd %s627, %s635
          %s637 = sadd.s32 %s27, %s26
          %s638 = smul.addr %s637, 128
          %s639 = scalar_lea.hbm %s8, %s638
          %s641 = sshll.u32 %s630, 4
          %s642 = int_to_ptr.vmem [resolvable:$true] %s641
          %644 = dma.vmem_to_hbm [thread:$0]  %s642, 128, %s639, %s627
        $region64: #{tpu_custom_call.1} parent=51 // pred_fallthru
          _
      $region52: #{tpu_custom_call.1} parent=5 // pred_fallthru
        _
      %p645 = scmp.le.s32.totalorder 2, %s17
      // Predicated region
      $region65: #{tpu_custom_call.1} parent=5 // pred_check
        %p646 = pneg %p645
      $region66: #{tpu_custom_call.1} parent=5 // pred_check_branch
        %648 = sbr.rel (%p646) target = $region68
      $region67: #{tpu_custom_call.1} parent=5 // pred_region
        %s649 = ssub.s32 %s17, 2
        // Predicated region
        $region69: #{tpu_custom_call.1} parent=67 // pred_check
          %p650 = pneg %p235
        $region70: #{tpu_custom_call.1} parent=67 // pred_check_branch
          %652 = sbr.rel (%p650) target = $region72
        $region71: #{tpu_custom_call.1} parent=67 // pred_region
          %s653 = sand.u32 %s220, 1
          %s654 = scalar_lea.sflag [#allocation5], %s653
          %s655 = sand.u32 %s220, 1
          %s656 = smul.addr %s655, 8
          %s657 = scalar_lea.vmem [#allocation4], %s656
          %658 = dma.done %s654, 128
        $region72: #{tpu_custom_call.1} parent=67 // pred_fallthru
          _
      $region68: #{tpu_custom_call.1} parent=5 // pred_fallthru
        _
    $region6: #{tpu_custom_call.1} parent=1 // loop_footer
      %s21 = sadd.s32 1, %s17
    $region7: #{tpu_custom_call.1} parent=1 // loop_footer_branch
      %16 = sbr.rel target = $region3
    $region8: #{tpu_custom_call.1} parent=1 // loop_exit
      _
    %659 = vsyncpa [#allocation5], 1
    %s660 = scalar_lea.sflag [#allocation5], 1
    %661 = vsyncpa %s660, 1

</llo_original>
